<compile_context>
chip_gen: v6e
topology: v6e:2x2x1
jax: 0.10.0
libtpu: 0.0.40
codegen_flags: <defaults>
</compile_context>

<pallas_src>
import math

import jax
import jax.numpy as jnp
from jax import lax
from jax.experimental import pallas as pl
from jax.experimental.pallas import tpu as pltpu


def _self_attention_kernel(x_ref, wqkv_ref, o_ref):
    bt, S, H = x_ref.shape
    Ap = wqkv_ref.shape[1] // 3

    # Collapse (bt, S) into the matmul M dimension: a single 2-D MXU matmul
    # (layout-free merge of the leading axes, last dim unchanged).
    x2d = x_ref[...].reshape(bt * S, H)
    qkv = jnp.dot(x2d, wqkv_ref[...],
                  preferred_element_type=jnp.float32)        # (bt*S, 3*Ap)

    # 128-lane-aligned slices (Ap is a multiple of 128) -> zero-cost views.
    # The 1/sqrt(A) scale is already folded into the W_q columns on the host.
    q = qkv[:, 0 * Ap:1 * Ap].reshape(bt, S, Ap)
    k = qkv[:, 1 * Ap:2 * Ap].reshape(bt, S, Ap)
    v = qkv[:, 2 * Ap:3 * Ap].reshape(bt, S, Ap)

    # Batched contraction on the shared Ap axis -> MXU, no explicit k.T.
    scores = lax.dot_general(
        q, k,
        dimension_numbers=(((2,), (2,)), ((0,), (0,))),
        preferred_element_type=jnp.float32,
    )                                                        # (bt, S, S)

    # Numerically-stable softmax over the last axis.
    m = jnp.max(scores, axis=-1, keepdims=True)
    e = jnp.exp(scores - m)
    denom = jnp.sum(e, axis=-1, keepdims=True)
    # EUP approximate reciprocal + one Newton step: keeps the division off the
    # VALU slot while remaining ~f32-exact (preserves the 1e-5 tolerance).
    inv = pl.reciprocal(denom, approx=True)
    inv = inv * (jnp.float32(2.0) - denom * inv)
    p = e * inv

    out = lax.dot_general(
        p, v,
        dimension_numbers=(((2,), (1,)), ((0,), (0,))),
        preferred_element_type=jnp.float32,
    )                                                        # (bt, S, Ap)
    o_ref[...] = out.astype(o_ref.dtype)


def _round_up(n, m):
    return ((n + m - 1) // m) * m


def _physical_vmem_bytes():
    """Per-generation physical VMEM; conservative (v7x-sized) fallback."""
    try:
        info = pltpu.get_tpu_info()
        cap = getattr(info, "vmem_capacity_bytes", None)
        if cap:
            return int(cap)
    except Exception:
        pass
    return 64 * 1024 * 1024


def _pick_batch_tile(B, S, H, Ap, vmem_budget_bytes):
    """Pick a batch tile whose *actual* VMEM footprint fits the budget.

    Accounting (per the perf review):
      * x and out blocks are double-buffered by the BlockSpec pipeline (x2),
      * the (H, 3*Ap) weight is counted double-buffered even though we request
        Buffered(1) (conservative, covers the fallback path),
      * softmax keeps ~3 (bt, S, S) f32 temporaries alive (scores, e, p),
      * qkv + out temporaries add ~4 (bt, S, Ap).
    """
    weight_bytes = 2 * 4 * H * 3 * Ap
    per_batch = 4 * (2 * S * H + 6 * S * Ap + 3 * S * S)
    if weight_bytes + per_batch > vmem_budget_bytes:
        # TODO(synk): flash-style online softmax over KV tiles for long S.
        raise ValueError(
            f"sequence length {S} too large for the untiled attention kernel")
    # Keep at least 2 grid steps when B allows: overlaps the next x-block DMA
    # with compute and gives both v7x TensorCores work.
    max_bt = B // 2 if B >= 2 else 1
    candidates = [
        bt for bt in range(1, max_bt + 1)
        if B % bt == 0 and weight_bytes + bt * per_batch <= vmem_budget_bytes
    ]
    # Prefer an even number of grid steps (balanced megacore split on v7x),
    # then the largest tile that fits.
    return max(candidates, key=lambda bt: ((B // bt) % 2 == 0, bt))


def self_attention(x, w_q, w_k, w_v):
    """x: (B, S, H) f32; w_*: (H, A) f32 (pre-transposed torch weights).

    Returns (B, S, A) f32, matching SelfAttention.forward (bias=False).
    """
    B, S, H = x.shape
    A = w_q.shape[1]
    Ap = _round_up(A, 128)  # 128-lane aligned q/k/v split + lane-dense output

    scale = jnp.float32(1.0 / math.sqrt(float(A)))

    def pad(w):
        return jnp.pad(w, ((0, 0), (0, Ap - A))) if Ap != A else w

    # One-time host-side weight prep: fold the softmax scale into W_q and fuse
    # the three projections into a single lane-aligned (H, 3*Ap) operand.
    w_qkv = jnp.concatenate([pad(w_q * scale), pad(w_k), pad(w_v)], axis=1)

    # Chip-aware VMEM budget: use at most half of physical VMEM
    # (v5e/v6e: 64 MiB, v7x: 32 MiB), leaving headroom for Mosaic scratch.
    vmem_limit = min(_physical_vmem_bytes() // 2, 100 * 1024 * 1024)
    bt = _pick_batch_tile(B, S, H, Ap, vmem_limit)
    grid = (B // bt,)

    flops = 2 * B * S * H * (3 * Ap) + 4 * B * S * S * Ap
    transcendentals = B * S * S + B * S
    bytes_accessed = 4 * (B * S * H + H * 3 * Ap + B * S * Ap)

    def build(weight_pipeline_mode):
        w_kwargs = {}
        if weight_pipeline_mode is not None:
            w_kwargs["pipeline_mode"] = weight_pipeline_mode
        return pl.pallas_call(
            _self_attention_kernel,
            out_shape=jax.ShapeDtypeStruct((B, S, Ap), x.dtype),
            grid_spec=pltpu.PrefetchScalarGridSpec(
                num_scalar_prefetch=0,
                grid=grid,
                in_specs=[
                    pl.BlockSpec((bt, S, H), lambda b: (b, 0, 0)),
                    # Weight block index never changes -> single buffer.
                    pl.BlockSpec((H, 3 * Ap), lambda b: (0, 0), **w_kwargs),
                ],
                out_specs=pl.BlockSpec((bt, S, Ap), lambda b: (b, 0, 0)),
            ),
            compiler_params=pltpu.CompilerParams(
                dimension_semantics=("parallel",),
                vmem_limit_bytes=vmem_limit,
            ),
            cost_estimate=pl.CostEstimate(
                flops=flops,
                transcendentals=transcendentals,
                bytes_accessed=bytes_accessed,
            ),
        )

    try:
        out_padded = build(pl.Buffered(1))(x, w_qkv)
    except Exception:
        # Fallback for jax versions where a single-buffered pipeline_mode on
        # the constant weight block is unavailable/rejected.
        out_padded = build(None)(x, w_qkv)

    return out_padded[..., :A] if Ap != A else out_padded


def self_attention_ref(x, w_q, w_k, w_v):
    A = w_q.shape[1]
    q = x @ w_q
    k = x @ w_k
    v = x @ w_v
    scores = jnp.einsum("bqa,bka->bqk", q, k) / jnp.sqrt(jnp.float32(A))
    w = jax.nn.softmax(scores, axis=-1)
    return jnp.einsum("bqk,bka->bqa", w, v)


if __name__ == "__main__":
    B, S, H, A = 2, 8, 32, 16   # batch, seq, hidden_size, attention_size

    key = jax.random.PRNGKey(0)
    kx, kq, kk, kv = jax.random.split(key, 4)

    x = jax.random.normal(kx, (B, S, H), dtype=jnp.float32)
    # nn.Linear(hidden, attention, bias=False) weights, stored as (H, A) == weight.T
    bound = 1.0 / math.sqrt(H)
    w_q = jax.random.uniform(kq, (H, A), jnp.float32, -bound, bound)
    w_k = jax.random.uniform(kk, (H, A), jnp.float32, -bound, bound)
    w_v = jax.random.uniform(kv, (H, A), jnp.float32, -bound, bound)

    out = jax.block_until_ready(self_attention(x, w_q, w_k, w_v))

    ref = self_attention_ref(x, w_q, w_k, w_v)
    assert out.shape == (B, S, A)
    assert jnp.allclose(out, ref, atol=1e-5, rtol=1e-5), "mismatch vs reference"

    print("KERNEL_OK")
</pallas_src>

<mosaic_0001>
module attributes {stable_mosaic.version = 11 : i64} {
  func.func @_self_attention_kernel(%arg0: i32, %arg1: memref<1x8x32xf32, #tpu.memory_space<vmem>>, %arg2: memref<32x384xf32, #tpu.memory_space<vmem>>, %arg3: memref<1x8x128xf32, #tpu.memory_space<vmem>>) attributes {dimension_semantics = [#tpu.dimension_semantics<parallel>], iteration_bounds = array<i64: 2>, scalar_prefetch = 0 : i64, scratch_operands = 0 : i64, tpu.core_type = #tpu.core_type<tc>, window_params = [{transform_indices = @transform_0, window_bounds = array<i64: 1, 8, 32>}, {pipeline_mode = #tpu.pipeline_mode<synchronous>, transform_indices = @transform_1, window_bounds = array<i64: 32, 384>}, {transform_indices = @transform_2, window_bounds = array<i64: 1, 8, 128>}]} {
    %c0 = arith.constant 0 : index
    %c0_0 = arith.constant 0 : index
    %c0_1 = arith.constant 0 : index
    %0 = vector.load %arg1[%c0, %c0_0, %c0_1] : memref<1x8x32xf32, #tpu.memory_space<vmem>>, vector<1x8x32xf32>
    %1 = vector.shape_cast %0 : vector<1x8x32xf32> to vector<8x32xf32>
    %c0_2 = arith.constant 0 : index
    %c0_3 = arith.constant 0 : index
    %2 = vector.load %arg2[%c0_2, %c0_3] : memref<32x384xf32, #tpu.memory_space<vmem>>, vector<32x384xf32>
    %cst = arith.constant dense<0.000000e+00> : vector<8x384xf32>
    %3 = tpu.matmul %1, %2, %cst {dimension_numbers = #tpu.dot_dimension_numbers<[1], [0], [0], [1], [0, 0, 1, 1], [], []>} : vector<8x32xf32>, vector<32x384xf32>, vector<8x384xf32> -> vector<8x384xf32>
    %4 = vector.extract_strided_slice %3 {offsets = [0, 0], sizes = [8, 128], strides = [1, 1]} : vector<8x384xf32> to vector<8x128xf32>
    %5 = vector.shape_cast %4 : vector<8x128xf32> to vector<1x8x128xf32>
    %6 = vector.extract_strided_slice %3 {offsets = [0, 128], sizes = [8, 128], strides = [1, 1]} : vector<8x384xf32> to vector<8x128xf32>
    %7 = vector.shape_cast %6 : vector<8x128xf32> to vector<1x8x128xf32>
    %8 = vector.extract_strided_slice %3 {offsets = [0, 256], sizes = [8, 128], strides = [1, 1]} : vector<8x384xf32> to vector<8x128xf32>
    %9 = vector.shape_cast %8 : vector<8x128xf32> to vector<1x8x128xf32>
    %cst_4 = arith.constant dense<0.000000e+00> : vector<1x8x8xf32>
    %10 = tpu.matmul %5, %7, %cst_4 {dimension_numbers = #tpu.dot_dimension_numbers<[2], [2], [1], [1], [0, 0, 0, 1, 1, 1], [0], [0]>} : vector<1x8x128xf32>, vector<1x8x128xf32>, vector<1x8x8xf32> -> vector<1x8x8xf32>
    %cst_5 = arith.constant dense<0xFF800000> : vector<1x8xf32>
    %11 = vector.multi_reduction <maximumf>, %10, %cst_5 [2] : vector<1x8x8xf32> to vector<1x8xf32>
    %12 = vector.shape_cast %11 : vector<1x8xf32> to vector<1x8x1xf32>
    %13 = vector.broadcast %12 : vector<1x8x1xf32> to vector<1x8x8xf32>
    %14 = arith.subf %10, %13 : vector<1x8x8xf32>
    %15 = math.exp %14 : vector<1x8x8xf32>
    %cst_6 = arith.constant dense<0.000000e+00> : vector<1x8xf32>
    %16 = vector.multi_reduction <add>, %15, %cst_6 [2] : vector<1x8x8xf32> to vector<1x8xf32>
    %17 = vector.shape_cast %16 : vector<1x8xf32> to vector<1x8x1xf32>
    %18 = tpu.reciprocal %17 {approx = true} : vector<1x8x1xf32> -> vector<1x8x1xf32>
    %19 = arith.mulf %17, %18 : vector<1x8x1xf32>
    %cst_7 = arith.constant 2.000000e+00 : f32
    %20 = vector.broadcast %cst_7 : f32 to vector<1x8x1xf32>
    %21 = arith.subf %20, %19 : vector<1x8x1xf32>
    %22 = arith.mulf %18, %21 : vector<1x8x1xf32>
    %23 = vector.broadcast %22 : vector<1x8x1xf32> to vector<1x8x8xf32>
    %24 = arith.mulf %15, %23 : vector<1x8x8xf32>
    %cst_8 = arith.constant dense<0.000000e+00> : vector<1x8x128xf32>
    %25 = tpu.matmul %24, %9, %cst_8 {dimension_numbers = #tpu.dot_dimension_numbers<[2], [1], [1], [2], [0, 0, 0, 1, 1, 2], [0], [0]>} : vector<1x8x8xf32>, vector<1x8x128xf32>, vector<1x8x128xf32> -> vector<1x8x128xf32>
    %c0_9 = arith.constant 0 : index
    %c0_10 = arith.constant 0 : index
    %c0_11 = arith.constant 0 : index
    %26 = vector.load %arg3[%c0_9, %c0_10, %c0_11] : memref<1x8x128xf32, #tpu.memory_space<vmem>>, vector<1x8x128xf32>
    tpu.vector_store %arg3[%c0_9, %c0_10, %c0_11], %25 {strides = array<i32>} : memref<1x8x128xf32, #tpu.memory_space<vmem>>, vector<1x8x128xf32>,
    return
  }
  func.func @transform_0(%arg0: i32) -> (i32, i32, i32) {
    %c0_i32 = arith.constant 0 : i32
    %c0_i32_0 = arith.constant 0 : i32
    %c0_i32_1 = arith.constant 0 : i32
    return %arg0, %c0_i32, %c0_i32_0 : i32, i32, i32
  }
  func.func @transform_1(%arg0: i32) -> (i32, i32) {
    %c0_i32 = arith.constant 0 : i32
    %c0_i32_0 = arith.constant 0 : i32
    %c0_i32_1 = arith.constant 0 : i32
    return %c0_i32, %c0_i32_0 : i32, i32
  }
  func.func @transform_2(%arg0: i32) -> (i32, i32, i32) {
    %c0_i32 = arith.constant 0 : i32
    %c0_i32_0 = arith.constant 0 : i32
    %c0_i32_1 = arith.constant 0 : i32
    return %arg0, %c0_i32, %c0_i32_0 : i32, i32, i32
  }
}

module attributes {stable_mosaic.version = 11 : i64} {
  func.func @_self_attention_kernel(%arg0: i32, %arg1: memref<1x8x32xf32, #tpu.memory_space<vmem>>, %arg2: memref<32x384xf32, #tpu.memory_space<vmem>>, %arg3: memref<1x8x128xf32, #tpu.memory_space<vmem>>) attributes {dimension_semantics = [#tpu.dimension_semantics<parallel>], iteration_bounds = array<i64: 2>, scalar_prefetch = 0 : i64, scratch_operands = 0 : i64, tpu.core_type = #tpu.core_type<tc>, window_params = [{transform_indices = @transform_0, window_bounds = array<i64: 1, 8, 32>}, {pipeline_mode = #tpu.pipeline_mode<synchronous>, transform_indices = @transform_1, window_bounds = array<i64: 32, 384>}, {transform_indices = @transform_2, window_bounds = array<i64: 1, 8, 128>}]} {
    %c0 = arith.constant 0 : index
    %c0_0 = arith.constant 0 : index
    %c0_1 = arith.constant 0 : index
    %0 = vector.load %arg1[%c0, %c0_0, %c0_1] : memref<1x8x32xf32, #tpu.memory_space<vmem>>, vector<1x8x32xf32>
    %1 = vector.shape_cast %0 : vector<1x8x32xf32> to vector<8x32xf32>
    %c0_2 = arith.constant 0 : index
    %c0_3 = arith.constant 0 : index
    %2 = vector.load %arg2[%c0_2, %c0_3] : memref<32x384xf32, #tpu.memory_space<vmem>>, vector<32x384xf32>
    %cst = arith.constant dense<0.000000e+00> : vector<8x384xf32>
    %3 = tpu.matmul %1, %2, %cst {dimension_numbers = #tpu.dot_dimension_numbers<[1], [0], [0], [1], [0, 0, 1, 1], [], []>} : vector<8x32xf32>, vector<32x384xf32>, vector<8x384xf32> -> vector<8x384xf32>
    %4 = vector.extract_strided_slice %3 {offsets = [0, 0], sizes = [8, 128], strides = [1, 1]} : vector<8x384xf32> to vector<8x128xf32>
    %5 = vector.shape_cast %4 : vector<8x128xf32> to vector<1x8x128xf32>
    %6 = vector.extract_strided_slice %3 {offsets = [0, 128], sizes = [8, 128], strides = [1, 1]} : vector<8x384xf32> to vector<8x128xf32>
    %7 = vector.shape_cast %6 : vector<8x128xf32> to vector<1x8x128xf32>
    %8 = vector.extract_strided_slice %3 {offsets = [0, 256], sizes = [8, 128], strides = [1, 1]} : vector<8x384xf32> to vector<8x128xf32>
    %9 = vector.shape_cast %8 : vector<8x128xf32> to vector<1x8x128xf32>
    %cst_4 = arith.constant dense<0.000000e+00> : vector<1x8x8xf32>
    %10 = tpu.matmul %5, %7, %cst_4 {dimension_numbers = #tpu.dot_dimension_numbers<[2], [2], [1], [1], [0, 0, 0, 1, 1, 1], [0], [0]>} : vector<1x8x128xf32>, vector<1x8x128xf32>, vector<1x8x8xf32> -> vector<1x8x8xf32>
    %cst_5 = arith.constant dense<0xFF800000> : vector<1x8xf32>
    %11 = vector.multi_reduction <maximumf>, %10, %cst_5 [2] : vector<1x8x8xf32> to vector<1x8xf32>
    %12 = vector.shape_cast %11 : vector<1x8xf32> to vector<1x8x1xf32>
    %13 = vector.broadcast %12 : vector<1x8x1xf32> to vector<1x8x8xf32>
    %14 = arith.subf %10, %13 : vector<1x8x8xf32>
    %15 = math.exp %14 : vector<1x8x8xf32>
    %cst_6 = arith.constant dense<0.000000e+00> : vector<1x8xf32>
    %16 = vector.multi_reduction <add>, %15, %cst_6 [2] : vector<1x8x8xf32> to vector<1x8xf32>
    %17 = vector.shape_cast %16 : vector<1x8xf32> to vector<1x8x1xf32>
    %18 = tpu.reciprocal %17 {approx = true} : vector<1x8x1xf32> -> vector<1x8x1xf32>
    %19 = arith.mulf %17, %18 : vector<1x8x1xf32>
    %cst_7 = arith.constant 2.000000e+00 : f32
    %20 = vector.broadcast %cst_7 : f32 to vector<1x8x1xf32>
    %21 = arith.subf %20, %19 : vector<1x8x1xf32>
    %22 = arith.mulf %18, %21 : vector<1x8x1xf32>
    %23 = vector.broadcast %22 : vector<1x8x1xf32> to vector<1x8x8xf32>
    %24 = arith.mulf %15, %23 : vector<1x8x8xf32>
    %cst_8 = arith.constant dense<0.000000e+00> : vector<1x8x128xf32>
    %25 = tpu.matmul %24, %9, %cst_8 {dimension_numbers = #tpu.dot_dimension_numbers<[2], [1], [1], [2], [0, 0, 0, 1, 1, 2], [0], [0]>} : vector<1x8x8xf32>, vector<1x8x128xf32>, vector<1x8x128xf32> -> vector<1x8x128xf32>
    %c0_9 = arith.constant 0 : index
    %c0_10 = arith.constant 0 : index
    %c0_11 = arith.constant 0 : index
    %26 = vector.load %arg3[%c0_9, %c0_10, %c0_11] : memref<1x8x128xf32, #tpu.memory_space<vmem>>, vector<1x8x128xf32>
    tpu.vector_store %arg3[%c0_9, %c0_10, %c0_11], %25 {strides = array<i32>} : memref<1x8x128xf32, #tpu.memory_space<vmem>>, vector<1x8x128xf32>,
    return
  }
  func.func @transform_0(%arg0: i32) -> (i32, i32, i32) {
    %c0_i32 = arith.constant 0 : i32
    %c0_i32_0 = arith.constant 0 : i32
    %c0_i32_1 = arith.constant 0 : i32
    return %arg0, %c0_i32, %c0_i32_0 : i32, i32, i32
  }
  func.func @transform_1(%arg0: i32) -> (i32, i32) {
    %c0_i32 = arith.constant 0 : i32
    %c0_i32_0 = arith.constant 0 : i32
    %c0_i32_1 = arith.constant 0 : i32
    return %c0_i32, %c0_i32_0 : i32, i32
  }
  func.func @transform_2(%arg0: i32) -> (i32, i32, i32) {
    %c0_i32 = arith.constant 0 : i32
    %c0_i32_0 = arith.constant 0 : i32
    %c0_i32_1 = arith.constant 0 : i32
    return %arg0, %c0_i32, %c0_i32_0 : i32, i32, i32
  }
}

</mosaic_0001>

<llo_original>
// kernel: tpu_custom_call.1
$region0: #{tpu_custom_call.1}
  #allocation0 [shape = 'u32[]', space=smem, size = 0x4, offset = 0x4, fixed_abs, tag = 'smem constant byte address 0x4 - core index']
  #allocation1 [shape = 'u32[144,128]{1,0:T(1,128)}', space=vmem, size = 0x12000, scoped, tag = 'internal scratch']
  %s0 = inlined_call_operand.hbm [shape: f32[2,8,32], index: 0, kind: input, shape index: {}]
  %s1 = inlined_call_operand.hbm [shape: f32[32,384], index: 1, kind: input, shape index: {}]
  %s2 = inlined_call_operand.hbm [shape: f32[2,8,128], index: 2, kind: output, shape index: {}]
  %s3 = sld [smem:[#allocation0]]
  $region49: #{tpu_custom_call.1} parent=0
    _
  %s5 = ssub.s32 1, %s3
  %s6 = scalar_select 0, %s5, %s3
  $region1: #{tpu_custom_call.1} parent=0
    #allocation2 [shape = 'u8[8192]{0}', space=vmem, size = 0x2000, scoped, tag = 'input window, operand 0']
    #allocation3 [shape = 's32[2]{0}', space=sflag, size = 0x8, scoped, tag = 'scoped memory for tpu_custom_call.1']
    #allocation4 [shape = 's32[2]{0}', space=sflag, size = 0x8, scoped, tag = 'scoped memory for tpu_custom_call.1']
    #allocation5 [shape = 'u8[49152]{0}', space=vmem, size = 0xc000, scoped, tag = 'input window, operand 1, single buffered']
    #allocation6 [shape = 's32[1]{0}', space=sflag, size = 0x4, scoped, tag = 'scoped memory for tpu_custom_call.1']
    #allocation7 [shape = 'u8[8192]{0}', space=vmem, size = 0x2000, scoped, tag = 'output window, operand 0']
    %7 = vsyncpa [#allocation3], 0
    %s8 = scalar_lea.sflag [#allocation3], 1
    %9 = vsyncpa %s8, 0
    %10 = vsyncpa [#allocation6], 0
    %11 = vsyncpa [#allocation4], 0
    %s12 = scalar_lea.sflag [#allocation4], 1
    %13 = vsyncpa %s12, 0
    loop: start=0, step=1, limit=4
    $region2: #{tpu_custom_call.1} parent=1 // loop_pre_header
      _
    $region3: #{tpu_custom_call.1} parent=1 // loop_header
      %s15 = sphi 0, %s19
      %p16 = scmp.ge.s32.totalorder %s15, 4
      %s25 = sphi 0, %s27
      %s28 = sphi 0, %s25
      %s29 = sphi 0, %s28
      %s45 = sphi 0, %s29
      %s49 = sphi 0, %s49
      %s51 = sphi 0, %s49
      %s52 = sphi 0, %s51
      %s66 = sphi 0, %s52
      %s72 = sphi 0, %s74
      %s75 = sphi 0, %s72
      %s76 = sphi 0, %s75
      %s92 = sphi 0, %s76
    $region4: #{tpu_custom_call.1} parent=1 // loop_header_branch
      %18 = sbr.rel (%p16) target = $region8
    $region5: #{tpu_custom_call.1} parent=1 // loop_body
      %s20 = ssub.s32 %s15, 1
      %s21 = ssub.s32 %s15, 2
      %s22 = sadd.s32 %s15, 1
      %s23 = ssub.s32 %s15, %s22
      %p24 = scmp.eq.s32.totalorder %s23, 0
      %s26 = sadd.s32 %s25, 1
      %s27 = scalar_select %p24, %s25, %s26
      %p30 = pneg %p24
      %p31 = scmp.eq.s32.totalorder %s15, 1
      %p32 = por %p30, %p31
      %p33 = scmp.ne.s32.totalorder %s25, %s28
      %p34 = scmp.eq.s32.totalorder %s15, 0
      %p35 = por %p33, %p34
      %p36 = scmp.ne.s32.totalorder %s25, %s28
      %p37 = scmp.eq.s32.totalorder %s20, 1
      %p38 = por %p36, %p37
      %p39 = scmp.ne.s32.totalorder %s28, %s29
      %p40 = scmp.eq.s32.totalorder %s20, 0
      %p41 = por %p39, %p40
      %p42 = scmp.ne.s32.totalorder %s28, %s29
      %p43 = scmp.eq.s32.totalorder %s21, 1
      %p44 = por %p42, %p43
      %p46 = scmp.ne.s32.totalorder %s29, %s45
      %p47 = scmp.eq.s32.totalorder %s21, 0
      %p48 = por %p46, %p47
      %s50 = sadd.s32 %s49, 1
      %p53 = scmp.eq.s32.totalorder %s15, 1
      %p54 = scmp.ne.s32.totalorder %s49, %s51
      %p55 = scmp.eq.s32.totalorder %s15, 0
      %p56 = por %p54, %p55
      %p57 = scmp.ne.s32.totalorder %s49, %s51
      %p58 = scmp.eq.s32.totalorder %s20, 1
      %p59 = por %p57, %p58
      %p60 = scmp.ne.s32.totalorder %s51, %s52
      %p61 = scmp.eq.s32.totalorder %s20, 0
      %p62 = por %p60, %p61
      %p63 = scmp.ne.s32.totalorder %s51, %s52
      %p64 = scmp.eq.s32.totalorder %s21, 1
      %p65 = por %p63, %p64
      %p67 = scmp.ne.s32.totalorder %s52, %s66
      %p68 = scmp.eq.s32.totalorder %s21, 0
      %p69 = por %p67, %p68
      %s70 = ssub.s32 %s15, %s22
      %p71 = scmp.eq.s32.totalorder %s70, 0
      %s73 = sadd.s32 %s72, 1
      %s74 = scalar_select %p71, %s72, %s73
      %p77 = pneg %p71
      %p78 = scmp.eq.s32.totalorder %s15, 1
      %p79 = por %p77, %p78
      %p80 = scmp.ne.s32.totalorder %s72, %s75
      %p81 = scmp.eq.s32.totalorder %s15, 0
      %p82 = por %p80, %p81
      %p83 = scmp.ne.s32.totalorder %s72, %s75
      %p84 = scmp.eq.s32.totalorder %s20, 1
      %p85 = por %p83, %p84
      %p86 = scmp.ne.s32.totalorder %s75, %s76
      %p87 = scmp.eq.s32.totalorder %s20, 0
      %p88 = por %p86, %p87
      %p89 = scmp.ne.s32.totalorder %s75, %s76
      %p90 = scmp.eq.s32.totalorder %s21, 1
      %p91 = por %p89, %p90
      %p93 = scmp.ne.s32.totalorder %s76, %s92
      %p94 = scmp.eq.s32.totalorder %s21, 0
      %p95 = por %p93, %p94
      %p96 = scmp.le.s32.totalorder 1, %s15
      %p97 = scmp.lt.s32.totalorder %s15, 3
      %p98 = pnand %p96, %p97
      %p99 = pneg %p98
      // Predicated region
      $region9: #{tpu_custom_call.1} parent=5 // pred_check
        _
      $region10: #{tpu_custom_call.1} parent=5 // pred_check_branch
        %101 = sbr.rel (%p98) target = $region12
      $region11: #{tpu_custom_call.1} parent=5 // pred_region
        %s102 = ssub.s32 %s15, 1
        // Predicated region
        $region13: #{tpu_custom_call.1} parent=11 // pred_check
          %p103 = pneg %p62
        $region14: #{tpu_custom_call.1} parent=11 // pred_check_branch
          %105 = sbr.rel (%p103) target = $region16
        $region15: #{tpu_custom_call.1} parent=11 // pred_region
          %s107 = ssub.s32 1536, 1536
          %108 = vsyncadd [#allocation6], %s107
          %s109 = sshll.u32 [#allocation5], 4
          %s110 = int_to_ptr.vmem [resolvable:$true] %s109
          %115 = dma.hbm_to_vmem [thread:$0]  %s1, 1536, %s110, [#allocation6], 384, 384, 24
        $region16: #{tpu_custom_call.1} parent=11 // pred_fallthru
          _
      $region12: #{tpu_custom_call.1} parent=5 // pred_fallthru
        _
      %p116 = scmp.lt.s32.totalorder %s15, 2
      // Predicated region
      $region17: #{tpu_custom_call.1} parent=5 // pred_check
        %p117 = pneg %p116
      $region18: #{tpu_custom_call.1} parent=5 // pred_check_branch
        %119 = sbr.rel (%p117) target = $region20
      $region19: #{tpu_custom_call.1} parent=5 // pred_region
        // Predicated region
        $region21: #{tpu_custom_call.1} parent=19 // pred_check
          %p120 = pneg %p35
        $region22: #{tpu_custom_call.1} parent=19 // pred_check_branch
          %122 = sbr.rel (%p120) target = $region24
        $region23: #{tpu_custom_call.1} parent=19 // pred_region
          %s123 = sand.u32 %s25, 1
          %s124 = scalar_lea.sflag [#allocation3], %s123
          %s125 = sand.u32 %s25, 1
          %s126 = smul.addr %s125, 8
          %s127 = scalar_lea.vmem [#allocation2], %s126
          %s129 = ssub.s32 128, 128
          %130 = vsyncadd %s124, %s129
          %s131 = smul.addr %s15, 128
          %s132 = scalar_lea.hbm %s0, %s131
          %s134 = sshll.u32 %s127, 4
          %s135 = int_to_ptr.vmem [resolvable:$true] %s134
          %137 = dma.hbm_to_vmem [thread:$0]  %s132, 128, %s135, %s124
        $region24: #{tpu_custom_call.1} parent=19 // pred_fallthru
          _
      $region20: #{tpu_custom_call.1} parent=5 // pred_fallthru
        _
      %p138 = scmp.le.s32.totalorder 1, %s15
      %p139 = scmp.lt.s32.totalorder %s15, 3
      %p140 = pnand %p138, %p139
      %p141 = pneg %p140
      // Predicated region
      $region25: #{tpu_custom_call.1} parent=5 // pred_check
        _
      $region26: #{tpu_custom_call.1} parent=5 // pred_check_branch
        %143 = sbr.rel (%p140) target = $region28
      $region27: #{tpu_custom_call.1} parent=5 // pred_region
        %s144 = ssub.s32 %s15, 1
        %s145 = sand.u32 %s28, 1
        %s146 = scalar_lea.sflag [#allocation3], %s145
        %s147 = sand.u32 %s28, 1
        %s148 = smul.addr %s147, 8
        %s149 = scalar_lea.vmem [#allocation2], %s148
        // Predicated region
        $region29: #{tpu_custom_call.1} parent=27 // pred_check
          %p150 = pneg %p41
        $region30: #{tpu_custom_call.1} parent=27 // pred_check_branch
          %152 = sbr.rel (%p150) target = $region32
        $region31: #{tpu_custom_call.1} parent=27 // pred_region
          %153 = dma.done %s146, 128
        $region32: #{tpu_custom_call.1} parent=27 // pred_fallthru
          _
        // Predicated region
        $region33: #{tpu_custom_call.1} parent=27 // pred_check
          %p154 = pneg %p62
        $region34: #{tpu_custom_call.1} parent=27 // pred_check_branch
          %156 = sbr.rel (%p154) target = $region36
        $region35: #{tpu_custom_call.1} parent=27 // pred_region
          %157 = dma.done [#allocation6], 1536
        $region36: #{tpu_custom_call.1} parent=27 // pred_fallthru
          _
        %s158 = sand.u32 %s28, 1
        %s159 = scalar_lea.sflag [#allocation3], %s158
        %s160 = sand.u32 %s28, 1
        %s161 = smul.addr %s160, 8
        %s162 = scalar_lea.vmem [#allocation2], %s161
        %p163 = pneg %p41
        %p164 = pneg %p38
        %p165 = pneg %p62
        %p166 = pneg %p59
        %p167 = pneg %p88
        %p168 = pneg %p85
        %s169 = sand.u32 %s75, 1
        %s170 = scalar_lea.sflag [#allocation4], %s169
        %s171 = sand.u32 %s75, 1
        %s172 = smul.addr %s171, 8
        %s173 = scalar_lea.vmem [#allocation7], %s172
        %v174 = vld [vmem:[%s149] sm:$0xff]
        %v175 = vld [vmem:[#allocation5] sm:$0xff]
        %v176 = vld [vmem:[#allocation5 + $0x8] sm:$0xff]
        %v177 = vld [vmem:[#allocation5 + $0x10] sm:$0xff]
        %v178 = vld [vmem:[#allocation5 + $0x18] sm:$0xff]
        %v179 = vld [vmem:[#allocation5 + $0x20] sm:$0xff]
        %v180 = vld [vmem:[#allocation5 + $0x28] sm:$0xff]
        %v181 = vld [vmem:[#allocation5 + $0x30] sm:$0xff]
        %v182 = vld [vmem:[#allocation5 + $0x38] sm:$0xff]
        %v183 = vld [vmem:[#allocation5 + $0x40] sm:$0xff]
        %v184 = vld [vmem:[#allocation5 + $0x48] sm:$0xff]
        %v185 = vld [vmem:[#allocation5 + $0x50] sm:$0xff]
        %v186 = vld [vmem:[#allocation5 + $0x58] sm:$0xff]
        %vm187 = vcmask 261120
        %v189 = vsel %vm187, %v174, 0
        %191 = vmatprep.subr.mxu0 0.0
        %192 = vmatpush1.msra.mxu0 0.0
        %193 = vmatprep.subr.mxu0 0.0
        %194 = vmatpush1.msra.mxu0 0.0
        %195 = vmatprep.subr.mxu0 0.0
        %196 = vmatpush1.msra.mxu0 0.0
        %197 = vmatprep.subr.mxu0 0.0
        %198 = vmatpush1.msra.mxu0 0.0
        %199 = vmatprep.subr.mxu0 0.0
        %200 = vmatpush1.msra.mxu0 0.0
        %201 = vmatprep.subr.mxu0 0.0
        %202 = vmatpush1.msra.mxu0 0.0
        %203 = vmatprep.subr.mxu0 0.0
        %204 = vmatpush1.msra.mxu0 0.0
        %205 = vmatprep.subr.mxu0 0.0
        %206 = vmatpush1.msra.mxu0 0.0
        %207 = vmatprep.subr.mxu0 0.0
        %208 = vmatpush1.msra.mxu0 0.0
        %209 = vmatprep.subr.mxu0 0.0
        %210 = vmatpush1.msra.mxu0 0.0
        %211 = vmatprep.subr.mxu0 0.0
        %212 = vmatpush1.msra.mxu0 0.0
        %213 = vmatprep.subr.mxu0 0.0
        %214 = vmatpush1.msra.mxu0 0.0
        %215 = vmatprep.subr.mxu0 %v185
        %216 = vmatpush1.msra.mxu0 %v184
        %217 = vmatprep.subr.mxu0 %v182
        %218 = vmatpush1.msra.mxu0 %v181
        %219 = vmatprep.subr.mxu0 %v179
        %220 = vmatpush1.msra.mxu0 %v178
        %221 = vmatprep.subr.mxu0 %v176
        %222 = vmatpush1.msra.mxu0 %v175
        %223 = vmatprep.subr.mxu0 0.0
        %224 = vmatpush2.msra.mxu0 0.0
        %225 = vmatprep.subr.mxu0 0.0
        %226 = vmatpush2.msra.mxu0 0.0
        %227 = vmatprep.subr.mxu0 0.0
        %228 = vmatpush2.msra.mxu0 0.0
        %229 = vmatprep.subr.mxu0 0.0
        %230 = vmatpush2.msra.mxu0 0.0
        %231 = vmatprep.subr.mxu0 0.0
        %232 = vmatpush2.msra.mxu0 0.0
        %233 = vmatprep.subr.mxu0 0.0
        %234 = vmatpush2.msra.mxu0 0.0
        %235 = vmatprep.subr.mxu0 0.0
        %236 = vmatpush2.msra.mxu0 0.0
        %237 = vmatprep.subr.mxu0 0.0
        %238 = vmatpush2.msra.mxu0 0.0
        %239 = vmatprep.subr.mxu0 0.0
        %240 = vmatpush2.msra.mxu0 0.0
        %241 = vmatprep.subr.mxu0 0.0
        %242 = vmatpush2.msra.mxu0 0.0
        %243 = vmatprep.subr.mxu0 0.0
        %244 = vmatpush2.msra.mxu0 0.0
        %245 = vmatprep.subr.mxu0 0.0
        %246 = vmatpush2.msra.mxu0 0.0
        %247 = vmatprep.subr.mxu0 0.0
        %248 = vmatpush2.msra.mxu0 0.0
        %249 = vmatprep.subr.mxu0 0.0
        %250 = vmatpush2.msra.mxu0 0.0
        %251 = vmatprep.subr.mxu0 0.0
        %252 = vmatpush2.msra.mxu0 0.0
        %253 = vmatprep.subr.mxu0 0.0
        %254 = vmatpush2.msra.mxu0 0.0
        %255 = vmatprep.mubr.f32.mxu0 0.0
        %256 = vmatmul.mubr.f32.gmra.mxu0 %v189
        %v257 = vpop.f32.mrf.mxu0
        %v258 = vadd.f32 0.0, %v257
        %v259 = vpop.f32.mrf.mxu0
        %v260 = vadd.f32 0.0, %v259
        %261 = vdwg.mxu0
        %262 = vmatprep.subr.mxu0 0.0
        %263 = vmatpush1.msra.mxu0 0.0
        %264 = vmatprep.subr.mxu0 0.0
        %265 = vmatpush1.msra.mxu0 0.0
        %266 = vmatprep.subr.mxu0 0.0
        %267 = vmatpush1.msra.mxu0 0.0
        %268 = vmatprep.subr.mxu0 0.0
        %269 = vmatpush1.msra.mxu0 0.0
        %270 = vmatprep.subr.mxu0 0.0
        %271 = vmatpush1.msra.mxu0 0.0
        %272 = vmatprep.subr.mxu0 0.0
        %273 = vmatpush1.msra.mxu0 0.0
        %274 = vmatprep.subr.mxu0 0.0
        %275 = vmatpush1.msra.mxu0 0.0
        %276 = vmatprep.subr.mxu0 0.0
        %277 = vmatpush1.msra.mxu0 0.0
        %278 = vmatprep.subr.mxu0 0.0
        %279 = vmatpush1.msra.mxu0 0.0
        %280 = vmatprep.subr.mxu0 0.0
        %281 = vmatpush1.msra.mxu0 0.0
        %282 = vmatprep.subr.mxu0 0.0
        %283 = vmatpush1.msra.mxu0 0.0
        %284 = vmatprep.subr.mxu0 0.0
        %285 = vmatpush1.msra.mxu0 0.0
        %286 = vmatprep.subr.mxu0 0.0
        %287 = vmatpush1.msra.mxu0 %v186
        %288 = vmatprep.subr.mxu0 0.0
        %289 = vmatpush1.msra.mxu0 %v183
        %290 = vmatprep.subr.mxu0 0.0
        %291 = vmatpush1.msra.mxu0 %v180
        %292 = vmatprep.subr.mxu0 0.0
        %293 = vmatpush1.msra.mxu0 %v177
        %294 = vmatprep.subr.mxu0 0.0
        %295 = vmatpush2.msra.mxu0 0.0
        %296 = vmatprep.subr.mxu0 0.0
        %297 = vmatpush2.msra.mxu0 0.0
        %298 = vmatprep.subr.mxu0 0.0
        %299 = vmatpush2.msra.mxu0 0.0
        %300 = vmatprep.subr.mxu0 0.0
        %301 = vmatpush2.msra.mxu0 0.0
        %302 = vmatprep.subr.mxu0 0.0
        %303 = vmatpush2.msra.mxu0 0.0
        %304 = vmatprep.subr.mxu0 0.0
        %305 = vmatpush2.msra.mxu0 0.0
        %306 = vmatprep.subr.mxu0 0.0
        %307 = vmatpush2.msra.mxu0 0.0
        %308 = vmatprep.subr.mxu0 0.0
        %309 = vmatpush2.msra.mxu0 0.0
        %310 = vmatprep.subr.mxu0 0.0
        %311 = vmatpush2.msra.mxu0 0.0
        %312 = vmatprep.subr.mxu0 0.0
        %313 = vmatpush2.msra.mxu0 0.0
        %314 = vmatprep.subr.mxu0 0.0
        %315 = vmatpush2.msra.mxu0 0.0
        %316 = vmatprep.subr.mxu0 0.0
        %317 = vmatpush2.msra.mxu0 0.0
        %318 = vmatprep.subr.mxu0 0.0
        %319 = vmatpush2.msra.mxu0 0.0
        %320 = vmatprep.subr.mxu0 0.0
        %321 = vmatpush2.msra.mxu0 0.0
        %322 = vmatprep.subr.mxu0 0.0
        %323 = vmatpush2.msra.mxu0 0.0
        %324 = vmatprep.subr.mxu0 0.0
        %325 = vmatpush2.msra.mxu0 0.0
        %326 = vmatprep.mubr.f32.mxu0 0.0
        %327 = vmatmul.mubr.f32.gmra.mxu0 %v189
        %v328 = vpop.f32.mrf.mxu0
        %v329 = vadd.f32 0.0, %v328
        %v330 = vpop.f32.mrf.mxu0
        %331 = vdwg.mxu0
        %332 = vmatprep.subr.mxu0 0.0
        %333 = vmatpush1.xpose.msra.mxu0 0.0
        %334 = vmatprep.subr.mxu0 0.0
        %335 = vmatpush1.xpose.msra.mxu0 0.0
        %336 = vmatprep.subr.mxu0 0.0
        %337 = vmatpush1.xpose.msra.mxu0 0.0
        %338 = vmatprep.subr.mxu0 0.0
        %339 = vmatpush1.xpose.msra.mxu0 0.0
        %340 = vmatprep.subr.mxu0 0.0
        %341 = vmatpush1.xpose.msra.mxu0 0.0
        %342 = vmatprep.subr.mxu0 0.0
        %343 = vmatpush1.xpose.msra.mxu0 0.0
        %344 = vmatprep.subr.mxu0 0.0
        %345 = vmatpush1.xpose.msra.mxu0 0.0
        %346 = vmatprep.subr.mxu0 0.0
        %347 = vmatpush1.xpose.msra.mxu0 0.0
        %348 = vmatprep.subr.mxu0 0.0
        %349 = vmatpush1.xpose.msra.mxu0 0.0
        %350 = vmatprep.subr.mxu0 0.0
        %351 = vmatpush1.xpose.msra.mxu0 0.0
        %352 = vmatprep.subr.mxu0 0.0
        %353 = vmatpush1.xpose.msra.mxu0 0.0
        %354 = vmatprep.subr.mxu0 0.0
        %355 = vmatpush1.xpose.msra.mxu0 0.0
        %356 = vmatprep.subr.mxu0 0.0
        %357 = vmatpush1.xpose.msra.mxu0 0.0
        %358 = vmatprep.subr.mxu0 0.0
        %359 = vmatpush1.xpose.msra.mxu0 0.0
        %360 = vmatprep.subr.mxu0 0.0
        %361 = vmatpush1.xpose.msra.mxu0 0.0
        %362 = vmatprep.subr.mxu0 0.0
        %363 = vmatpush1.xpose.msra.mxu0 %v260
        %364 = vmatprep.subr.mxu0 0.0
        %365 = vmatpush2.xpose.msra.mxu0 0.0
        %366 = vmatprep.subr.mxu0 0.0
        %367 = vmatpush2.xpose.msra.mxu0 0.0
        %368 = vmatprep.subr.mxu0 0.0
        %369 = vmatpush2.xpose.msra.mxu0 0.0
        %370 = vmatprep.subr.mxu0 0.0
        %371 = vmatpush2.xpose.msra.mxu0 0.0
        %372 = vmatprep.subr.mxu0 0.0
        %373 = vmatpush2.xpose.msra.mxu0 0.0
        %374 = vmatprep.subr.mxu0 0.0
        %375 = vmatpush2.xpose.msra.mxu0 0.0
        %376 = vmatprep.subr.mxu0 0.0
        %377 = vmatpush2.xpose.msra.mxu0 0.0
        %378 = vmatprep.subr.mxu0 0.0
        %379 = vmatpush2.xpose.msra.mxu0 0.0
        %380 = vmatprep.subr.mxu0 0.0
        %381 = vmatpush2.xpose.msra.mxu0 0.0
        %382 = vmatprep.subr.mxu0 0.0
        %383 = vmatpush2.xpose.msra.mxu0 0.0
        %384 = vmatprep.subr.mxu0 0.0
        %385 = vmatpush2.xpose.msra.mxu0 0.0
        %386 = vmatprep.subr.mxu0 0.0
        %387 = vmatpush2.xpose.msra.mxu0 0.0
        %388 = vmatprep.subr.mxu0 0.0
        %389 = vmatpush2.xpose.msra.mxu0 0.0
        %390 = vmatprep.subr.mxu0 0.0
        %391 = vmatpush2.xpose.msra.mxu0 0.0
        %392 = vmatprep.subr.mxu0 0.0
        %393 = vmatpush2.xpose.msra.mxu0 0.0
        %394 = vmatprep.subr.mxu0 0.0
        %395 = vmatpush2.xpose.msra.mxu0 0.0
        %396 = vmatprep.mubr.f32.mxu0 0.0
        %397 = vmatmul.mubr.f32.gmra.mxu0 %v258
        %v398 = vpop.f32.mrf.mxu0
        %v399 = vadd.f32 0.0, %v398
        %v400 = vpop.f32.mrf.mxu0
        %401 = vdwg.mxu0
        %vm402 = vcmask 64512
        %v403 = vsel %vm402, %v399, -inf
        %404 = vmax.xlane.f32.xlu0 %v403
        %v405 = vpop.xlane.xlu0 %404
        %v406 = vsub.f32 %v399, %v405
        %v407 = vmul.f32 %v406, 1.442695
        %v408 = vpow.pop %v407
        %v409 = vsel %vm402, %v408, 0.0
        %410 = vadd.xlane.f32.xlu0 %v409
        %v411 = vpop.xlane.xlu0 %410
        %v412 = vrcp.pop %v411
        %v413 = vmul.f32 %v411, %v412
        %v414 = vsub.f32 2.0, %v413
        %v415 = vmul.f32 %v412, %v414
        %v416 = vmul.f32 %v408, %v415
        %v418 = vsel %vm402, %v416, 0
        %420 = vmatprep.subr.mxu0 0.0
        %421 = vmatpush1.msra.mxu0 0.0
        %422 = vmatprep.subr.mxu0 0.0
        %423 = vmatpush1.msra.mxu0 0.0
        %424 = vmatprep.subr.mxu0 0.0
        %425 = vmatpush1.msra.mxu0 0.0
        %426 = vmatprep.subr.mxu0 0.0
        %427 = vmatpush1.msra.mxu0 0.0
        %428 = vmatprep.subr.mxu0 0.0
        %429 = vmatpush1.msra.mxu0 0.0
        %430 = vmatprep.subr.mxu0 0.0
        %431 = vmatpush1.msra.mxu0 0.0
        %432 = vmatprep.subr.mxu0 0.0
        %433 = vmatpush1.msra.mxu0 0.0
        %434 = vmatprep.subr.mxu0 0.0
        %435 = vmatpush1.msra.mxu0 0.0
        %436 = vmatprep.subr.mxu0 0.0
        %437 = vmatpush1.msra.mxu0 0.0
        %438 = vmatprep.subr.mxu0 0.0
        %439 = vmatpush1.msra.mxu0 0.0
        %440 = vmatprep.subr.mxu0 0.0
        %441 = vmatpush1.msra.mxu0 0.0
        %442 = vmatprep.subr.mxu0 0.0
        %443 = vmatpush1.msra.mxu0 0.0
        %444 = vmatprep.subr.mxu0 0.0
        %445 = vmatpush1.msra.mxu0 0.0
        %446 = vmatprep.subr.mxu0 0.0
        %447 = vmatpush1.msra.mxu0 0.0
        %448 = vmatprep.subr.mxu0 0.0
        %449 = vmatpush1.msra.mxu0 0.0
        %450 = vmatprep.subr.mxu0 0.0
        %451 = vmatpush1.msra.mxu0 %v329
        %452 = vmatprep.subr.mxu0 0.0
        %453 = vmatpush2.msra.mxu0 0.0
        %454 = vmatprep.subr.mxu0 0.0
        %455 = vmatpush2.msra.mxu0 0.0
        %456 = vmatprep.subr.mxu0 0.0
        %457 = vmatpush2.msra.mxu0 0.0
        %458 = vmatprep.subr.mxu0 0.0
        %459 = vmatpush2.msra.mxu0 0.0
        %460 = vmatprep.subr.mxu0 0.0
        %461 = vmatpush2.msra.mxu0 0.0
        %462 = vmatprep.subr.mxu0 0.0
        %463 = vmatpush2.msra.mxu0 0.0
        %464 = vmatprep.subr.mxu0 0.0
        %465 = vmatpush2.msra.mxu0 0.0
        %466 = vmatprep.subr.mxu0 0.0
        %467 = vmatpush2.msra.mxu0 0.0
        %468 = vmatprep.subr.mxu0 0.0
        %469 = vmatpush2.msra.mxu0 0.0
        %470 = vmatprep.subr.mxu0 0.0
        %471 = vmatpush2.msra.mxu0 0.0
        %472 = vmatprep.subr.mxu0 0.0
        %473 = vmatpush2.msra.mxu0 0.0
        %474 = vmatprep.subr.mxu0 0.0
        %475 = vmatpush2.msra.mxu0 0.0
        %476 = vmatprep.subr.mxu0 0.0
        %477 = vmatpush2.msra.mxu0 0.0
        %478 = vmatprep.subr.mxu0 0.0
        %479 = vmatpush2.msra.mxu0 0.0
        %480 = vmatprep.subr.mxu0 0.0
        %481 = vmatpush2.msra.mxu0 0.0
        %482 = vmatprep.subr.mxu0 0.0
        %483 = vmatpush2.msra.mxu0 0.0
        %484 = vmatprep.mubr.f32.mxu0 0.0
        %485 = vmatmul.mubr.f32.gmra.mxu0 %v418
        %v486 = vpop.f32.mrf.mxu0
        %v487 = vadd.f32 0.0, %v486
        %v488 = vpop.f32.mrf.mxu0
        %489 = vdwg.mxu0
        %490 = vst [vmem:[%s173] sm:$0xff] %v487
        %s491 = sand.u32 %s75, 1
        %s492 = scalar_lea.sflag [#allocation4], %s491
        %s493 = sand.u32 %s75, 1
        %s494 = smul.addr %s493, 8
        %s495 = scalar_lea.vmem [#allocation7], %s494
        // Predicated region
        $region37: #{tpu_custom_call.1} parent=27 // pred_check
          %p496 = pneg %p85
        $region38: #{tpu_custom_call.1} parent=27 // pred_check_branch
          %498 = sbr.rel (%p496) target = $region40
        $region39: #{tpu_custom_call.1} parent=27 // pred_region
          %s500 = ssub.s32 128, 128
          %501 = vsyncadd %s492, %s500
          %s502 = smul.addr %s20, 128
          %s503 = scalar_lea.hbm %s2, %s502
          %s505 = sshll.u32 %s495, 4
          %s506 = int_to_ptr.vmem [resolvable:$true] %s505
          %508 = dma.vmem_to_hbm [thread:$0]  %s506, 128, %s503, %s492
        $region40: #{tpu_custom_call.1} parent=27 // pred_fallthru
          _
      $region28: #{tpu_custom_call.1} parent=5 // pred_fallthru
        _
      %p509 = scmp.le.s32.totalorder 2, %s15
      // Predicated region
      $region41: #{tpu_custom_call.1} parent=5 // pred_check
        %p510 = pneg %p509
      $region42: #{tpu_custom_call.1} parent=5 // pred_check_branch
        %512 = sbr.rel (%p510) target = $region44
      $region43: #{tpu_custom_call.1} parent=5 // pred_region
        %s513 = ssub.s32 %s15, 2
        // Predicated region
        $region45: #{tpu_custom_call.1} parent=43 // pred_check
          %p514 = pneg %p91
        $region46: #{tpu_custom_call.1} parent=43 // pred_check_branch
          %516 = sbr.rel (%p514) target = $region48
        $region47: #{tpu_custom_call.1} parent=43 // pred_region
          %s517 = sand.u32 %s76, 1
          %s518 = scalar_lea.sflag [#allocation4], %s517
          %s519 = sand.u32 %s76, 1
          %s520 = smul.addr %s519, 8
          %s521 = scalar_lea.vmem [#allocation7], %s520
          %522 = dma.done %s518, 128
        $region48: #{tpu_custom_call.1} parent=43 // pred_fallthru
          _
      $region44: #{tpu_custom_call.1} parent=5 // pred_fallthru
        _
    $region6: #{tpu_custom_call.1} parent=1 // loop_footer
      %s19 = sadd.s32 1, %s15
    $region7: #{tpu_custom_call.1} parent=1 // loop_footer_branch
      %14 = sbr.rel target = $region3
    $region8: #{tpu_custom_call.1} parent=1 // loop_exit
      _
    %523 = vsyncpa [#allocation3], 1
    %s524 = scalar_lea.sflag [#allocation3], 1
    %525 = vsyncpa %s524, 1
    %526 = vsyncpa [#allocation6], 1
    %527 = vsyncpa [#allocation4], 1
    %s528 = scalar_lea.sflag [#allocation4], 1
    %529 = vsyncpa %s528, 1

// kernel: tpu_custom_call.1
$region0: #{tpu_custom_call.1}
  #allocation0 [shape = 'u32[]', space=smem, size = 0x4, offset = 0x4, fixed_abs, tag = 'smem constant byte address 0x4 - core index']
  #allocation1 [shape = 'u32[144,128]{1,0:T(1,128)}', space=vmem, size = 0x12000, scoped, tag = 'internal scratch']
  %s0 = inlined_call_operand.hbm [shape: f32[2,8,32], index: 0, kind: input, shape index: {}]
  %s1 = inlined_call_operand.hbm [shape: f32[32,384], index: 1, kind: input, shape index: {}]
  %s2 = inlined_call_operand.hbm [shape: f32[2,8,128], index: 2, kind: output, shape index: {}]
  %s3 = sld [smem:[#allocation0]]
  $region49: #{tpu_custom_call.1} parent=0
    _
  %s5 = ssub.s32 1, %s3
  %s6 = scalar_select 0, %s5, %s3
  $region1: #{tpu_custom_call.1} parent=0
    #allocation2 [shape = 'u8[8192]{0}', space=vmem, size = 0x2000, scoped, tag = 'input window, operand 0']
    #allocation3 [shape = 's32[2]{0}', space=sflag, size = 0x8, scoped, tag = 'scoped memory for tpu_custom_call.1']
    #allocation4 [shape = 's32[2]{0}', space=sflag, size = 0x8, scoped, tag = 'scoped memory for tpu_custom_call.1']
    #allocation5 [shape = 'u8[49152]{0}', space=vmem, size = 0xc000, scoped, tag = 'input window, operand 1, single buffered']
    #allocation6 [shape = 's32[1]{0}', space=sflag, size = 0x4, scoped, tag = 'scoped memory for tpu_custom_call.1']
    #allocation7 [shape = 'u8[8192]{0}', space=vmem, size = 0x2000, scoped, tag = 'output window, operand 0']
    %7 = vsyncpa [#allocation3], 0
    %s8 = scalar_lea.sflag [#allocation3], 1
    %9 = vsyncpa %s8, 0
    %10 = vsyncpa [#allocation6], 0
    %11 = vsyncpa [#allocation4], 0
    %s12 = scalar_lea.sflag [#allocation4], 1
    %13 = vsyncpa %s12, 0
    loop: start=0, step=1, limit=4
    $region2: #{tpu_custom_call.1} parent=1 // loop_pre_header
      _
    $region3: #{tpu_custom_call.1} parent=1 // loop_header
      %s15 = sphi 0, %s19
      %p16 = scmp.ge.s32.totalorder %s15, 4
      %s25 = sphi 0, %s27
      %s28 = sphi 0, %s25
      %s29 = sphi 0, %s28
      %s45 = sphi 0, %s29
      %s49 = sphi 0, %s49
      %s51 = sphi 0, %s49
      %s52 = sphi 0, %s51
      %s66 = sphi 0, %s52
      %s72 = sphi 0, %s74
      %s75 = sphi 0, %s72
      %s76 = sphi 0, %s75
      %s92 = sphi 0, %s76
    $region4: #{tpu_custom_call.1} parent=1 // loop_header_branch
      %18 = sbr.rel (%p16) target = $region8
    $region5: #{tpu_custom_call.1} parent=1 // loop_body
      %s20 = ssub.s32 %s15, 1
      %s21 = ssub.s32 %s15, 2
      %s22 = sadd.s32 %s15, 1
      %s23 = ssub.s32 %s15, %s22
      %p24 = scmp.eq.s32.totalorder %s23, 0
      %s26 = sadd.s32 %s25, 1
      %s27 = scalar_select %p24, %s25, %s26
      %p30 = pneg %p24
      %p31 = scmp.eq.s32.totalorder %s15, 1
      %p32 = por %p30, %p31
      %p33 = scmp.ne.s32.totalorder %s25, %s28
      %p34 = scmp.eq.s32.totalorder %s15, 0
      %p35 = por %p33, %p34
      %p36 = scmp.ne.s32.totalorder %s25, %s28
      %p37 = scmp.eq.s32.totalorder %s20, 1
      %p38 = por %p36, %p37
      %p39 = scmp.ne.s32.totalorder %s28, %s29
      %p40 = scmp.eq.s32.totalorder %s20, 0
      %p41 = por %p39, %p40
      %p42 = scmp.ne.s32.totalorder %s28, %s29
      %p43 = scmp.eq.s32.totalorder %s21, 1
      %p44 = por %p42, %p43
      %p46 = scmp.ne.s32.totalorder %s29, %s45
      %p47 = scmp.eq.s32.totalorder %s21, 0
      %p48 = por %p46, %p47
      %s50 = sadd.s32 %s49, 1
      %p53 = scmp.eq.s32.totalorder %s15, 1
      %p54 = scmp.ne.s32.totalorder %s49, %s51
      %p55 = scmp.eq.s32.totalorder %s15, 0
      %p56 = por %p54, %p55
      %p57 = scmp.ne.s32.totalorder %s49, %s51
      %p58 = scmp.eq.s32.totalorder %s20, 1
      %p59 = por %p57, %p58
      %p60 = scmp.ne.s32.totalorder %s51, %s52
      %p61 = scmp.eq.s32.totalorder %s20, 0
      %p62 = por %p60, %p61
      %p63 = scmp.ne.s32.totalorder %s51, %s52
      %p64 = scmp.eq.s32.totalorder %s21, 1
      %p65 = por %p63, %p64
      %p67 = scmp.ne.s32.totalorder %s52, %s66
      %p68 = scmp.eq.s32.totalorder %s21, 0
      %p69 = por %p67, %p68
      %s70 = ssub.s32 %s15, %s22
      %p71 = scmp.eq.s32.totalorder %s70, 0
      %s73 = sadd.s32 %s72, 1
      %s74 = scalar_select %p71, %s72, %s73
      %p77 = pneg %p71
      %p78 = scmp.eq.s32.totalorder %s15, 1
      %p79 = por %p77, %p78
      %p80 = scmp.ne.s32.totalorder %s72, %s75
      %p81 = scmp.eq.s32.totalorder %s15, 0
      %p82 = por %p80, %p81
      %p83 = scmp.ne.s32.totalorder %s72, %s75
      %p84 = scmp.eq.s32.totalorder %s20, 1
      %p85 = por %p83, %p84
      %p86 = scmp.ne.s32.totalorder %s75, %s76
      %p87 = scmp.eq.s32.totalorder %s20, 0
      %p88 = por %p86, %p87
      %p89 = scmp.ne.s32.totalorder %s75, %s76
      %p90 = scmp.eq.s32.totalorder %s21, 1
      %p91 = por %p89, %p90
      %p93 = scmp.ne.s32.totalorder %s76, %s92
      %p94 = scmp.eq.s32.totalorder %s21, 0
      %p95 = por %p93, %p94
      %p96 = scmp.le.s32.totalorder 1, %s15
      %p97 = scmp.lt.s32.totalorder %s15, 3
      %p98 = pnand %p96, %p97
      %p99 = pneg %p98
      // Predicated region
      $region9: #{tpu_custom_call.1} parent=5 // pred_check
        _
      $region10: #{tpu_custom_call.1} parent=5 // pred_check_branch
        %101 = sbr.rel (%p98) target = $region12
      $region11: #{tpu_custom_call.1} parent=5 // pred_region
        %s102 = ssub.s32 %s15, 1
        // Predicated region
        $region13: #{tpu_custom_call.1} parent=11 // pred_check
          %p103 = pneg %p62
        $region14: #{tpu_custom_call.1} parent=11 // pred_check_branch
          %105 = sbr.rel (%p103) target = $region16
        $region15: #{tpu_custom_call.1} parent=11 // pred_region
          %s107 = ssub.s32 1536, 1536
          %108 = vsyncadd [#allocation6], %s107
          %s109 = sshll.u32 [#allocation5], 4
          %s110 = int_to_ptr.vmem [resolvable:$true] %s109
          %115 = dma.hbm_to_vmem [thread:$0]  %s1, 1536, %s110, [#allocation6], 384, 384, 24
        $region16: #{tpu_custom_call.1} parent=11 // pred_fallthru
          _
      $region12: #{tpu_custom_call.1} parent=5 // pred_fallthru
        _
      %p116 = scmp.lt.s32.totalorder %s15, 2
      // Predicated region
      $region17: #{tpu_custom_call.1} parent=5 // pred_check
        %p117 = pneg %p116
      $region18: #{tpu_custom_call.1} parent=5 // pred_check_branch
        %119 = sbr.rel (%p117) target = $region20
      $region19: #{tpu_custom_call.1} parent=5 // pred_region
        // Predicated region
        $region21: #{tpu_custom_call.1} parent=19 // pred_check
          %p120 = pneg %p35
        $region22: #{tpu_custom_call.1} parent=19 // pred_check_branch
          %122 = sbr.rel (%p120) target = $region24
        $region23: #{tpu_custom_call.1} parent=19 // pred_region
          %s123 = sand.u32 %s25, 1
          %s124 = scalar_lea.sflag [#allocation3], %s123
          %s125 = sand.u32 %s25, 1
          %s126 = smul.addr %s125, 8
          %s127 = scalar_lea.vmem [#allocation2], %s126
          %s129 = ssub.s32 128, 128
          %130 = vsyncadd %s124, %s129
          %s131 = smul.addr %s15, 128
          %s132 = scalar_lea.hbm %s0, %s131
          %s134 = sshll.u32 %s127, 4
          %s135 = int_to_ptr.vmem [resolvable:$true] %s134
          %137 = dma.hbm_to_vmem [thread:$0]  %s132, 128, %s135, %s124
        $region24: #{tpu_custom_call.1} parent=19 // pred_fallthru
          _
      $region20: #{tpu_custom_call.1} parent=5 // pred_fallthru
        _
      %p138 = scmp.le.s32.totalorder 1, %s15
      %p139 = scmp.lt.s32.totalorder %s15, 3
      %p140 = pnand %p138, %p139
      %p141 = pneg %p140
      // Predicated region
      $region25: #{tpu_custom_call.1} parent=5 // pred_check
        _
      $region26: #{tpu_custom_call.1} parent=5 // pred_check_branch
        %143 = sbr.rel (%p140) target = $region28
      $region27: #{tpu_custom_call.1} parent=5 // pred_region
        %s144 = ssub.s32 %s15, 1
        %s145 = sand.u32 %s28, 1
        %s146 = scalar_lea.sflag [#allocation3], %s145
        %s147 = sand.u32 %s28, 1
        %s148 = smul.addr %s147, 8
        %s149 = scalar_lea.vmem [#allocation2], %s148
        // Predicated region
        $region29: #{tpu_custom_call.1} parent=27 // pred_check
          %p150 = pneg %p41
        $region30: #{tpu_custom_call.1} parent=27 // pred_check_branch
          %152 = sbr.rel (%p150) target = $region32
        $region31: #{tpu_custom_call.1} parent=27 // pred_region
          %153 = dma.done %s146, 128
        $region32: #{tpu_custom_call.1} parent=27 // pred_fallthru
          _
        // Predicated region
        $region33: #{tpu_custom_call.1} parent=27 // pred_check
          %p154 = pneg %p62
        $region34: #{tpu_custom_call.1} parent=27 // pred_check_branch
          %156 = sbr.rel (%p154) target = $region36
        $region35: #{tpu_custom_call.1} parent=27 // pred_region
          %157 = dma.done [#allocation6], 1536
        $region36: #{tpu_custom_call.1} parent=27 // pred_fallthru
          _
        %s158 = sand.u32 %s28, 1
        %s159 = scalar_lea.sflag [#allocation3], %s158
        %s160 = sand.u32 %s28, 1
        %s161 = smul.addr %s160, 8
        %s162 = scalar_lea.vmem [#allocation2], %s161
        %p163 = pneg %p41
        %p164 = pneg %p38
        %p165 = pneg %p62
        %p166 = pneg %p59
        %p167 = pneg %p88
        %p168 = pneg %p85
        %s169 = sand.u32 %s75, 1
        %s170 = scalar_lea.sflag [#allocation4], %s169
        %s171 = sand.u32 %s75, 1
        %s172 = smul.addr %s171, 8
        %s173 = scalar_lea.vmem [#allocation7], %s172
        %v174 = vld [vmem:[%s149] sm:$0xff]
        %v175 = vld [vmem:[#allocation5] sm:$0xff]
        %v176 = vld [vmem:[#allocation5 + $0x8] sm:$0xff]
        %v177 = vld [vmem:[#allocation5 + $0x10] sm:$0xff]
        %v178 = vld [vmem:[#allocation5 + $0x18] sm:$0xff]
        %v179 = vld [vmem:[#allocation5 + $0x20] sm:$0xff]
        %v180 = vld [vmem:[#allocation5 + $0x28] sm:$0xff]
        %v181 = vld [vmem:[#allocation5 + $0x30] sm:$0xff]
        %v182 = vld [vmem:[#allocation5 + $0x38] sm:$0xff]
        %v183 = vld [vmem:[#allocation5 + $0x40] sm:$0xff]
        %v184 = vld [vmem:[#allocation5 + $0x48] sm:$0xff]
        %v185 = vld [vmem:[#allocation5 + $0x50] sm:$0xff]
        %v186 = vld [vmem:[#allocation5 + $0x58] sm:$0xff]
        %vm187 = vcmask 261120
        %v189 = vsel %vm187, %v174, 0
        %191 = vmatprep.subr.mxu0 0.0
        %192 = vmatpush1.msra.mxu0 0.0
        %193 = vmatprep.subr.mxu0 0.0
        %194 = vmatpush1.msra.mxu0 0.0
        %195 = vmatprep.subr.mxu0 0.0
        %196 = vmatpush1.msra.mxu0 0.0
        %197 = vmatprep.subr.mxu0 0.0
        %198 = vmatpush1.msra.mxu0 0.0
        %199 = vmatprep.subr.mxu0 0.0
        %200 = vmatpush1.msra.mxu0 0.0
        %201 = vmatprep.subr.mxu0 0.0
        %202 = vmatpush1.msra.mxu0 0.0
        %203 = vmatprep.subr.mxu0 0.0
        %204 = vmatpush1.msra.mxu0 0.0
        %205 = vmatprep.subr.mxu0 0.0
        %206 = vmatpush1.msra.mxu0 0.0
        %207 = vmatprep.subr.mxu0 0.0
        %208 = vmatpush1.msra.mxu0 0.0
        %209 = vmatprep.subr.mxu0 0.0
        %210 = vmatpush1.msra.mxu0 0.0
        %211 = vmatprep.subr.mxu0 0.0
        %212 = vmatpush1.msra.mxu0 0.0
        %213 = vmatprep.subr.mxu0 0.0
        %214 = vmatpush1.msra.mxu0 0.0
        %215 = vmatprep.subr.mxu0 %v185
        %216 = vmatpush1.msra.mxu0 %v184
        %217 = vmatprep.subr.mxu0 %v182
        %218 = vmatpush1.msra.mxu0 %v181
        %219 = vmatprep.subr.mxu0 %v179
        %220 = vmatpush1.msra.mxu0 %v178
        %221 = vmatprep.subr.mxu0 %v176
        %222 = vmatpush1.msra.mxu0 %v175
        %223 = vmatprep.subr.mxu0 0.0
        %224 = vmatpush2.msra.mxu0 0.0
        %225 = vmatprep.subr.mxu0 0.0
        %226 = vmatpush2.msra.mxu0 0.0
        %227 = vmatprep.subr.mxu0 0.0
        %228 = vmatpush2.msra.mxu0 0.0
        %229 = vmatprep.subr.mxu0 0.0
        %230 = vmatpush2.msra.mxu0 0.0
        %231 = vmatprep.subr.mxu0 0.0
        %232 = vmatpush2.msra.mxu0 0.0
        %233 = vmatprep.subr.mxu0 0.0
        %234 = vmatpush2.msra.mxu0 0.0
        %235 = vmatprep.subr.mxu0 0.0
        %236 = vmatpush2.msra.mxu0 0.0
        %237 = vmatprep.subr.mxu0 0.0
        %238 = vmatpush2.msra.mxu0 0.0
        %239 = vmatprep.subr.mxu0 0.0
        %240 = vmatpush2.msra.mxu0 0.0
        %241 = vmatprep.subr.mxu0 0.0
        %242 = vmatpush2.msra.mxu0 0.0
        %243 = vmatprep.subr.mxu0 0.0
        %244 = vmatpush2.msra.mxu0 0.0
        %245 = vmatprep.subr.mxu0 0.0
        %246 = vmatpush2.msra.mxu0 0.0
        %247 = vmatprep.subr.mxu0 0.0
        %248 = vmatpush2.msra.mxu0 0.0
        %249 = vmatprep.subr.mxu0 0.0
        %250 = vmatpush2.msra.mxu0 0.0
        %251 = vmatprep.subr.mxu0 0.0
        %252 = vmatpush2.msra.mxu0 0.0
        %253 = vmatprep.subr.mxu0 0.0
        %254 = vmatpush2.msra.mxu0 0.0
        %255 = vmatprep.mubr.f32.mxu0 0.0
        %256 = vmatmul.mubr.f32.gmra.mxu0 %v189
        %v257 = vpop.f32.mrf.mxu0
        %v258 = vadd.f32 0.0, %v257
        %v259 = vpop.f32.mrf.mxu0
        %v260 = vadd.f32 0.0, %v259
        %261 = vdwg.mxu0
        %262 = vmatprep.subr.mxu0 0.0
        %263 = vmatpush1.msra.mxu0 0.0
        %264 = vmatprep.subr.mxu0 0.0
        %265 = vmatpush1.msra.mxu0 0.0
        %266 = vmatprep.subr.mxu0 0.0
        %267 = vmatpush1.msra.mxu0 0.0
        %268 = vmatprep.subr.mxu0 0.0
        %269 = vmatpush1.msra.mxu0 0.0
        %270 = vmatprep.subr.mxu0 0.0
        %271 = vmatpush1.msra.mxu0 0.0
        %272 = vmatprep.subr.mxu0 0.0
        %273 = vmatpush1.msra.mxu0 0.0
        %274 = vmatprep.subr.mxu0 0.0
        %275 = vmatpush1.msra.mxu0 0.0
        %276 = vmatprep.subr.mxu0 0.0
        %277 = vmatpush1.msra.mxu0 0.0
        %278 = vmatprep.subr.mxu0 0.0
        %279 = vmatpush1.msra.mxu0 0.0
        %280 = vmatprep.subr.mxu0 0.0
        %281 = vmatpush1.msra.mxu0 0.0
        %282 = vmatprep.subr.mxu0 0.0
        %283 = vmatpush1.msra.mxu0 0.0
        %284 = vmatprep.subr.mxu0 0.0
        %285 = vmatpush1.msra.mxu0 0.0
        %286 = vmatprep.subr.mxu0 0.0
        %287 = vmatpush1.msra.mxu0 %v186
        %288 = vmatprep.subr.mxu0 0.0
        %289 = vmatpush1.msra.mxu0 %v183
        %290 = vmatprep.subr.mxu0 0.0
        %291 = vmatpush1.msra.mxu0 %v180
        %292 = vmatprep.subr.mxu0 0.0
        %293 = vmatpush1.msra.mxu0 %v177
        %294 = vmatprep.subr.mxu0 0.0
        %295 = vmatpush2.msra.mxu0 0.0
        %296 = vmatprep.subr.mxu0 0.0
        %297 = vmatpush2.msra.mxu0 0.0
        %298 = vmatprep.subr.mxu0 0.0
        %299 = vmatpush2.msra.mxu0 0.0
        %300 = vmatprep.subr.mxu0 0.0
        %301 = vmatpush2.msra.mxu0 0.0
        %302 = vmatprep.subr.mxu0 0.0
        %303 = vmatpush2.msra.mxu0 0.0
        %304 = vmatprep.subr.mxu0 0.0
        %305 = vmatpush2.msra.mxu0 0.0
        %306 = vmatprep.subr.mxu0 0.0
        %307 = vmatpush2.msra.mxu0 0.0
        %308 = vmatprep.subr.mxu0 0.0
        %309 = vmatpush2.msra.mxu0 0.0
        %310 = vmatprep.subr.mxu0 0.0
        %311 = vmatpush2.msra.mxu0 0.0
        %312 = vmatprep.subr.mxu0 0.0
        %313 = vmatpush2.msra.mxu0 0.0
        %314 = vmatprep.subr.mxu0 0.0
        %315 = vmatpush2.msra.mxu0 0.0
        %316 = vmatprep.subr.mxu0 0.0
        %317 = vmatpush2.msra.mxu0 0.0
        %318 = vmatprep.subr.mxu0 0.0
        %319 = vmatpush2.msra.mxu0 0.0
        %320 = vmatprep.subr.mxu0 0.0
        %321 = vmatpush2.msra.mxu0 0.0
        %322 = vmatprep.subr.mxu0 0.0
        %323 = vmatpush2.msra.mxu0 0.0
        %324 = vmatprep.subr.mxu0 0.0
        %325 = vmatpush2.msra.mxu0 0.0
        %326 = vmatprep.mubr.f32.mxu0 0.0
        %327 = vmatmul.mubr.f32.gmra.mxu0 %v189
        %v328 = vpop.f32.mrf.mxu0
        %v329 = vadd.f32 0.0, %v328
        %v330 = vpop.f32.mrf.mxu0
        %331 = vdwg.mxu0
        %332 = vmatprep.subr.mxu0 0.0
        %333 = vmatpush1.xpose.msra.mxu0 0.0
        %334 = vmatprep.subr.mxu0 0.0
        %335 = vmatpush1.xpose.msra.mxu0 0.0
        %336 = vmatprep.subr.mxu0 0.0
        %337 = vmatpush1.xpose.msra.mxu0 0.0
        %338 = vmatprep.subr.mxu0 0.0
        %339 = vmatpush1.xpose.msra.mxu0 0.0
        %340 = vmatprep.subr.mxu0 0.0
        %341 = vmatpush1.xpose.msra.mxu0 0.0
        %342 = vmatprep.subr.mxu0 0.0
        %343 = vmatpush1.xpose.msra.mxu0 0.0
        %344 = vmatprep.subr.mxu0 0.0
        %345 = vmatpush1.xpose.msra.mxu0 0.0
        %346 = vmatprep.subr.mxu0 0.0
        %347 = vmatpush1.xpose.msra.mxu0 0.0
        %348 = vmatprep.subr.mxu0 0.0
        %349 = vmatpush1.xpose.msra.mxu0 0.0
        %350 = vmatprep.subr.mxu0 0.0
        %351 = vmatpush1.xpose.msra.mxu0 0.0
        %352 = vmatprep.subr.mxu0 0.0
        %353 = vmatpush1.xpose.msra.mxu0 0.0
        %354 = vmatprep.subr.mxu0 0.0
        %355 = vmatpush1.xpose.msra.mxu0 0.0
        %356 = vmatprep.subr.mxu0 0.0
        %357 = vmatpush1.xpose.msra.mxu0 0.0
        %358 = vmatprep.subr.mxu0 0.0
        %359 = vmatpush1.xpose.msra.mxu0 0.0
        %360 = vmatprep.subr.mxu0 0.0
        %361 = vmatpush1.xpose.msra.mxu0 0.0
        %362 = vmatprep.subr.mxu0 0.0
        %363 = vmatpush1.xpose.msra.mxu0 %v260
        %364 = vmatprep.subr.mxu0 0.0
        %365 = vmatpush2.xpose.msra.mxu0 0.0
        %366 = vmatprep.subr.mxu0 0.0
        %367 = vmatpush2.xpose.msra.mxu0 0.0
        %368 = vmatprep.subr.mxu0 0.0
        %369 = vmatpush2.xpose.msra.mxu0 0.0
        %370 = vmatprep.subr.mxu0 0.0
        %371 = vmatpush2.xpose.msra.mxu0 0.0
        %372 = vmatprep.subr.mxu0 0.0
        %373 = vmatpush2.xpose.msra.mxu0 0.0
        %374 = vmatprep.subr.mxu0 0.0
        %375 = vmatpush2.xpose.msra.mxu0 0.0
        %376 = vmatprep.subr.mxu0 0.0
        %377 = vmatpush2.xpose.msra.mxu0 0.0
        %378 = vmatprep.subr.mxu0 0.0
        %379 = vmatpush2.xpose.msra.mxu0 0.0
        %380 = vmatprep.subr.mxu0 0.0
        %381 = vmatpush2.xpose.msra.mxu0 0.0
        %382 = vmatprep.subr.mxu0 0.0
        %383 = vmatpush2.xpose.msra.mxu0 0.0
        %384 = vmatprep.subr.mxu0 0.0
        %385 = vmatpush2.xpose.msra.mxu0 0.0
        %386 = vmatprep.subr.mxu0 0.0
        %387 = vmatpush2.xpose.msra.mxu0 0.0
        %388 = vmatprep.subr.mxu0 0.0
        %389 = vmatpush2.xpose.msra.mxu0 0.0
        %390 = vmatprep.subr.mxu0 0.0
        %391 = vmatpush2.xpose.msra.mxu0 0.0
        %392 = vmatprep.subr.mxu0 0.0
        %393 = vmatpush2.xpose.msra.mxu0 0.0
        %394 = vmatprep.subr.mxu0 0.0
        %395 = vmatpush2.xpose.msra.mxu0 0.0
        %396 = vmatprep.mubr.f32.mxu0 0.0
        %397 = vmatmul.mubr.f32.gmra.mxu0 %v258
        %v398 = vpop.f32.mrf.mxu0
        %v399 = vadd.f32 0.0, %v398
        %v400 = vpop.f32.mrf.mxu0
        %401 = vdwg.mxu0
        %vm402 = vcmask 64512
        %v403 = vsel %vm402, %v399, -inf
        %404 = vmax.xlane.f32.xlu0 %v403
        %v405 = vpop.xlane.xlu0 %404
        %v406 = vsub.f32 %v399, %v405
        %v407 = vmul.f32 %v406, 1.442695
        %v408 = vpow.pop %v407
        %v409 = vsel %vm402, %v408, 0.0
        %410 = vadd.xlane.f32.xlu0 %v409
        %v411 = vpop.xlane.xlu0 %410
        %v412 = vrcp.pop %v411
        %v413 = vmul.f32 %v411, %v412
        %v414 = vsub.f32 2.0, %v413
        %v415 = vmul.f32 %v412, %v414
        %v416 = vmul.f32 %v408, %v415
        %v418 = vsel %vm402, %v416, 0
        %420 = vmatprep.subr.mxu0 0.0
        %421 = vmatpush1.msra.mxu0 0.0
        %422 = vmatprep.subr.mxu0 0.0
        %423 = vmatpush1.msra.mxu0 0.0
        %424 = vmatprep.subr.mxu0 0.0
        %425 = vmatpush1.msra.mxu0 0.0
        %426 = vmatprep.subr.mxu0 0.0
        %427 = vmatpush1.msra.mxu0 0.0
        %428 = vmatprep.subr.mxu0 0.0
        %429 = vmatpush1.msra.mxu0 0.0
        %430 = vmatprep.subr.mxu0 0.0
        %431 = vmatpush1.msra.mxu0 0.0
        %432 = vmatprep.subr.mxu0 0.0
        %433 = vmatpush1.msra.mxu0 0.0
        %434 = vmatprep.subr.mxu0 0.0
        %435 = vmatpush1.msra.mxu0 0.0
        %436 = vmatprep.subr.mxu0 0.0
        %437 = vmatpush1.msra.mxu0 0.0
        %438 = vmatprep.subr.mxu0 0.0
        %439 = vmatpush1.msra.mxu0 0.0
        %440 = vmatprep.subr.mxu0 0.0
        %441 = vmatpush1.msra.mxu0 0.0
        %442 = vmatprep.subr.mxu0 0.0
        %443 = vmatpush1.msra.mxu0 0.0
        %444 = vmatprep.subr.mxu0 0.0
        %445 = vmatpush1.msra.mxu0 0.0
        %446 = vmatprep.subr.mxu0 0.0
        %447 = vmatpush1.msra.mxu0 0.0
        %448 = vmatprep.subr.mxu0 0.0
        %449 = vmatpush1.msra.mxu0 0.0
        %450 = vmatprep.subr.mxu0 0.0
        %451 = vmatpush1.msra.mxu0 %v329
        %452 = vmatprep.subr.mxu0 0.0
        %453 = vmatpush2.msra.mxu0 0.0
        %454 = vmatprep.subr.mxu0 0.0
        %455 = vmatpush2.msra.mxu0 0.0
        %456 = vmatprep.subr.mxu0 0.0
        %457 = vmatpush2.msra.mxu0 0.0
        %458 = vmatprep.subr.mxu0 0.0
        %459 = vmatpush2.msra.mxu0 0.0
        %460 = vmatprep.subr.mxu0 0.0
        %461 = vmatpush2.msra.mxu0 0.0
        %462 = vmatprep.subr.mxu0 0.0
        %463 = vmatpush2.msra.mxu0 0.0
        %464 = vmatprep.subr.mxu0 0.0
        %465 = vmatpush2.msra.mxu0 0.0
        %466 = vmatprep.subr.mxu0 0.0
        %467 = vmatpush2.msra.mxu0 0.0
        %468 = vmatprep.subr.mxu0 0.0
        %469 = vmatpush2.msra.mxu0 0.0
        %470 = vmatprep.subr.mxu0 0.0
        %471 = vmatpush2.msra.mxu0 0.0
        %472 = vmatprep.subr.mxu0 0.0
        %473 = vmatpush2.msra.mxu0 0.0
        %474 = vmatprep.subr.mxu0 0.0
        %475 = vmatpush2.msra.mxu0 0.0
        %476 = vmatprep.subr.mxu0 0.0
        %477 = vmatpush2.msra.mxu0 0.0
        %478 = vmatprep.subr.mxu0 0.0
        %479 = vmatpush2.msra.mxu0 0.0
        %480 = vmatprep.subr.mxu0 0.0
        %481 = vmatpush2.msra.mxu0 0.0
        %482 = vmatprep.subr.mxu0 0.0
        %483 = vmatpush2.msra.mxu0 0.0
        %484 = vmatprep.mubr.f32.mxu0 0.0
        %485 = vmatmul.mubr.f32.gmra.mxu0 %v418
        %v486 = vpop.f32.mrf.mxu0
        %v487 = vadd.f32 0.0, %v486
        %v488 = vpop.f32.mrf.mxu0
        %489 = vdwg.mxu0
        %490 = vst [vmem:[%s173] sm:$0xff] %v487
        %s491 = sand.u32 %s75, 1
        %s492 = scalar_lea.sflag [#allocation4], %s491
        %s493 = sand.u32 %s75, 1
        %s494 = smul.addr %s493, 8
        %s495 = scalar_lea.vmem [#allocation7], %s494
        // Predicated region
        $region37: #{tpu_custom_call.1} parent=27 // pred_check
          %p496 = pneg %p85
        $region38: #{tpu_custom_call.1} parent=27 // pred_check_branch
          %498 = sbr.rel (%p496) target = $region40
        $region39: #{tpu_custom_call.1} parent=27 // pred_region
          %s500 = ssub.s32 128, 128
          %501 = vsyncadd %s492, %s500
          %s502 = smul.addr %s20, 128
          %s503 = scalar_lea.hbm %s2, %s502
          %s505 = sshll.u32 %s495, 4
          %s506 = int_to_ptr.vmem [resolvable:$true] %s505
          %508 = dma.vmem_to_hbm [thread:$0]  %s506, 128, %s503, %s492
        $region40: #{tpu_custom_call.1} parent=27 // pred_fallthru
          _
      $region28: #{tpu_custom_call.1} parent=5 // pred_fallthru
        _
      %p509 = scmp.le.s32.totalorder 2, %s15
      // Predicated region
      $region41: #{tpu_custom_call.1} parent=5 // pred_check
        %p510 = pneg %p509
      $region42: #{tpu_custom_call.1} parent=5 // pred_check_branch
        %512 = sbr.rel (%p510) target = $region44
      $region43: #{tpu_custom_call.1} parent=5 // pred_region
        %s513 = ssub.s32 %s15, 2
        // Predicated region
        $region45: #{tpu_custom_call.1} parent=43 // pred_check
          %p514 = pneg %p91
        $region46: #{tpu_custom_call.1} parent=43 // pred_check_branch
          %516 = sbr.rel (%p514) target = $region48
        $region47: #{tpu_custom_call.1} parent=43 // pred_region
          %s517 = sand.u32 %s76, 1
          %s518 = scalar_lea.sflag [#allocation4], %s517
          %s519 = sand.u32 %s76, 1
          %s520 = smul.addr %s519, 8
          %s521 = scalar_lea.vmem [#allocation7], %s520
          %522 = dma.done %s518, 128
        $region48: #{tpu_custom_call.1} parent=43 // pred_fallthru
          _
      $region44: #{tpu_custom_call.1} parent=5 // pred_fallthru
        _
    $region6: #{tpu_custom_call.1} parent=1 // loop_footer
      %s19 = sadd.s32 1, %s15
    $region7: #{tpu_custom_call.1} parent=1 // loop_footer_branch
      %14 = sbr.rel target = $region3
    $region8: #{tpu_custom_call.1} parent=1 // loop_exit
      _
    %523 = vsyncpa [#allocation3], 1
    %s524 = scalar_lea.sflag [#allocation3], 1
    %525 = vsyncpa %s524, 1
    %526 = vsyncpa [#allocation6], 1
    %527 = vsyncpa [#allocation4], 1
    %s528 = scalar_lea.sflag [#allocation4], 1
    %529 = vsyncpa %s528, 1

</llo_original>
